<compile_context>
chip_gen: v5e
topology: v5e:2x2
jax: 0.10.0
libtpu: 0.0.40
codegen_flags: <defaults>
</compile_context>

<pallas_src>
import functools
from typing import NamedTuple

import jax
import jax.numpy as jnp
from jax.experimental import pallas as pl
from jax.experimental.pallas import tpu as pltpu


def _round_up(x, m):
    return ((x + m - 1) // m) * m


class DiagGaussianParams(NamedTuple):
    w_fused: jax.Array   # (H, ZP)  compute dtype (bf16 by default)
    b_fused: jax.Array   # (1, ZP)  f32
    z: int
    zp_half: int


def prepare_diag_gaussian_params(w_mu, b_mu, w_ls, b_ls,
                                 compute_dtype=jnp.bfloat16):
    """One-time packing of the two heads into a single lane-aligned weight.

    mu lanes live at [0, Z); log_sigma lanes at [ZP_half, ZP_half + Z) where
    ZP_half = round_up(Z, 128), so both in-kernel slices start on a vreg-lane
    boundary.  Do this once (like parameter init), NOT per forward call.
    """
    H, Z = w_mu.shape
    zp_half = max(128, _round_up(Z, 128))
    ZP = 2 * zp_half
    w_fused = jnp.zeros((H, ZP), compute_dtype)
    w_fused = w_fused.at[:, :Z].set(w_mu.astype(compute_dtype))
    w_fused = w_fused.at[:, zp_half:zp_half + Z].set(w_ls.astype(compute_dtype))
    b_fused = jnp.zeros((1, ZP), jnp.float32)
    b_fused = b_fused.at[0, :Z].set(b_mu.astype(jnp.float32))
    b_fused = b_fused.at[0, zp_half:zp_half + Z].set(b_ls.astype(jnp.float32))
    return DiagGaussianParams(w_fused, b_fused, Z, zp_half)


def _diag_gaussian_kernel(x_ref, w_ref, b_ref, mu_ref, ls_ref, *, z, zp_half):
    """One fused MXU matmul for both heads; clamp only the log_sigma slab."""
    x = x_ref[...].astype(w_ref.dtype)               # in-register cast, no HBM cost
    y = jnp.dot(x, w_ref[...], preferred_element_type=jnp.float32)
    mu = y[:, :z] + b_ref[:, :z]                      # aligned lane slice
    ls = y[:, zp_half:zp_half + z] + b_ref[:, zp_half:zp_half + z]
    mu_ref[...] = mu.astype(mu_ref.dtype)
    ls_ref[...] = jnp.clip(ls, -10.0, 2.0).astype(ls_ref.dtype)


def _choose_tile_b(B, H, Z, ZP, x_bytes, w_bytes, tile_b_cap=None,
                   stream_budget_bytes=12 << 20):
    """Largest multiple-of-8 batch tile whose streamed VMEM fits the budget."""
    per_row = 2 * H * x_bytes + 2 * 2 * Z * 4         # dbl-buffered x + 2 dbl-buffered outs
    fixed = 2 * H * ZP * w_bytes + 2 * ZP * 4         # weights/bias (worst case: 2 buffers)
    avail = max(stream_budget_bytes - fixed, 8 * per_row)
    tile = max(8, min(int(avail // per_row), 2048))
    tile = (tile // 8) * 8
    if tile_b_cap is not None:
        tile = min(tile, max(8, (int(tile_b_cap) // 8) * 8))
    tile = min(tile, _round_up(B, 8))
    # Keep >= 2 grid steps when possible so v7x's second TensorCore has work.
    if B > 8 and -(-B // tile) == 1:
        tile = max(8, _round_up(-(-B // 2), 8))
    return tile


def _build_call(B, H, Z, ZP, zp_half, tile_b, vmem_limit, single_buffer_params):
    resident = {"pipeline_mode": pl.Buffered(1)} if single_buffer_params else {}
    kernel = functools.partial(_diag_gaussian_kernel, z=Z, zp_half=zp_half)
    return pl.pallas_call(
        kernel,
        out_shape=(jax.ShapeDtypeStruct((B, Z), jnp.float32),
                   jax.ShapeDtypeStruct((B, Z), jnp.float32)),
        grid=(pl.cdiv(B, tile_b),),
        in_specs=[
            pl.BlockSpec((tile_b, H), lambda i: (i, 0)),            # streamed x tiles
            pl.BlockSpec((H, ZP), lambda i: (0, 0), **resident),    # resident fused weight
            pl.BlockSpec((1, ZP), lambda i: (0, 0), **resident),    # resident fused bias
        ],
        out_specs=(pl.BlockSpec((tile_b, Z), lambda i: (i, 0)),     # mu
                   pl.BlockSpec((tile_b, Z), lambda i: (i, 0))),    # log_sigma
        compiler_params=pltpu.CompilerParams(
            dimension_semantics=("parallel",),                      # megacore on v7x
            vmem_limit_bytes=vmem_limit),
    )


def diag_gaussian_forward(x, params: DiagGaussianParams, *, tile_b_cap=None):
    """Returns (mu, log_sigma) of the MultivariateGaussian.

    x: (B, H) float32 or bfloat16 (bf16 halves the dominant HBM stream).
    params: output of prepare_diag_gaussian_params (built once).
    """
    w_fused, b_fused, Z, zp_half = params
    B, H = x.shape
    ZP = w_fused.shape[1]

    tile_b = _choose_tile_b(B, H, Z, ZP, x.dtype.itemsize,
                            w_fused.dtype.itemsize, tile_b_cap)

    stream = 2 * tile_b * H * x.dtype.itemsize + 2 * 2 * tile_b * Z * 4
    fixed = 2 * H * ZP * w_fused.dtype.itemsize + 2 * ZP * 4
    vmem_limit = int(min(max(2 * (stream + fixed), 16 << 20), 56 << 20))

    try:
        call = _build_call(B, H, Z, ZP, zp_half, tile_b, vmem_limit,
                           single_buffer_params=True)
        return call(x, w_fused, b_fused)
    except Exception:
        # Fallback if this JAX version rejects pl.Buffered(1) for resident inputs.
        call = _build_call(B, H, Z, ZP, zp_half, tile_b, vmem_limit,
                           single_buffer_params=False)
        return call(x, w_fused, b_fused)


def init_diag_gaussian_params(key, hidden_dim, z_dim):
    """Matches PyTorch weight_init: orthogonal_ weights, zero biases."""
    k_mu, k_ls = jax.random.split(key)
    ortho = jax.nn.initializers.orthogonal()
    # PyTorch Linear weight shape is (z_dim, hidden_dim); store transposed.
    w_mu = ortho(k_mu, (z_dim, hidden_dim), jnp.float32).T
    w_ls = ortho(k_ls, (z_dim, hidden_dim), jnp.float32).T
    b_mu = jnp.zeros((z_dim,), jnp.float32)
    b_ls = jnp.zeros((z_dim,), jnp.float32)
    return w_mu, b_mu, w_ls, b_ls


if __name__ == "__main__":
    hidden_dim, z_dim = 32, 16

    key = jax.random.PRNGKey(0)
    k_p, k1, k2, k3 = jax.random.split(key, 4)
    w_mu, b_mu, w_ls, b_ls = init_diag_gaussian_params(k_p, hidden_dim, z_dim)
    params = prepare_diag_gaussian_params(w_mu, b_mu, w_ls, b_ls)  # one-time pack

    w_mu_bf = w_mu.astype(jnp.bfloat16)
    w_ls_bf = w_ls.astype(jnp.bfloat16)

    def ref_bf16(x):  # same numerics as the kernel (bf16 inputs, f32 accumulate)
        xb = x.astype(jnp.bfloat16)
        mu = jnp.dot(xb, w_mu_bf, preferred_element_type=jnp.float32) + b_mu
        ls = jnp.dot(xb, w_ls_bf, preferred_element_type=jnp.float32) + b_ls
        return mu, jnp.clip(ls, -10.0, 2.0)

    def ref_f32(x):   # original module semantics (full f32)
        xf = x.astype(jnp.float32)
        mu = xf @ w_mu + b_mu
        ls = jnp.clip(xf @ w_ls + b_ls, -10.0, 2.0)
        return mu, ls

    def check(x, tile_b_cap=None):
        mu, log_sigma = diag_gaussian_forward(x, params, tile_b_cap=tile_b_cap)
        jax.block_until_ready((mu, log_sigma))
        assert mu.shape == (x.shape[0], z_dim)
        assert log_sigma.shape == (x.shape[0], z_dim)
        mu_r, ls_r = ref_bf16(x)
        mu_f, ls_f = ref_f32(x)
        assert jnp.allclose(mu, mu_r, atol=1e-4), "mu mismatch (bf16 ref)"
        assert jnp.allclose(log_sigma, ls_r, atol=1e-4), "log_sigma mismatch (bf16 ref)"
        assert jnp.allclose(mu, mu_f, atol=5e-2), "mu mismatch (f32 ref)"
        assert jnp.allclose(log_sigma, ls_f, atol=5e-2), "log_sigma mismatch (f32 ref)"

    # Aligned batch, f32 input.
    check(jax.random.normal(k1, (8, hidden_dim), jnp.float32))
    # Batch < sublane tile (exercises padded/partial-row writeback).
    check(jax.random.normal(k2, (5, hidden_dim), jnp.float32))
    # Multi-step pipelined grid with a partial final tile, bf16 input stream.
    check(jax.random.normal(k3, (40, hidden_dim), jnp.float32).astype(jnp.bfloat16),
          tile_b_cap=16)

    print("KERNEL_OK")
</pallas_src>

<mosaic_0001>
module attributes {stable_mosaic.version = 11 : i64} {
  func.func @_diag_gaussian_kernel(%arg0: i32, %arg1: memref<8x32xf32, #tpu.memory_space<vmem>>, %arg2: memref<32x256xbf16, #tpu.memory_space<vmem>>, %arg3: memref<1x256xf32, #tpu.memory_space<vmem>>, %arg4: memref<8x16xf32, #tpu.memory_space<vmem>>, %arg5: memref<8x16xf32, #tpu.memory_space<vmem>>) attributes {dimension_semantics = [#tpu.dimension_semantics<parallel>], iteration_bounds = array<i64: 1>, scalar_prefetch = 0 : i64, scratch_operands = 0 : i64, tpu.core_type = #tpu.core_type<tc>, window_params = [{transform_indices = @transform_0, window_bounds = array<i64: 8, 32>}, {pipeline_mode = #tpu.pipeline_mode<synchronous>, transform_indices = @transform_1, window_bounds = array<i64: 32, 256>}, {pipeline_mode = #tpu.pipeline_mode<synchronous>, transform_indices = @transform_2, window_bounds = array<i64: 1, 256>}, {transform_indices = @transform_3, window_bounds = array<i64: 8, 16>}, {transform_indices = @transform_4, window_bounds = array<i64: 8, 16>}]} {
    %c0 = arith.constant 0 : index
    %c0_0 = arith.constant 0 : index
    %0 = vector.load %arg1[%c0, %c0_0] : memref<8x32xf32, #tpu.memory_space<vmem>>, vector<8x32xf32>
    %1 = arith.truncf %0 : vector<8x32xf32> to vector<8x32xbf16>
    %c0_1 = arith.constant 0 : index
    %c0_2 = arith.constant 0 : index
    %2 = vector.load %arg2[%c0_1, %c0_2] : memref<32x256xbf16, #tpu.memory_space<vmem>>, vector<32x256xbf16>
    %cst = arith.constant dense<0.000000e+00> : vector<8x256xf32>
    %3 = tpu.matmul %1, %2, %cst {dimension_numbers = #tpu.dot_dimension_numbers<[1], [0], [0], [1], [0, 0, 1, 1], [], []>} : vector<8x32xbf16>, vector<32x256xbf16>, vector<8x256xf32> -> vector<8x256xf32>
    %4 = vector.extract_strided_slice %3 {offsets = [0, 0], sizes = [8, 16], strides = [1, 1]} : vector<8x256xf32> to vector<8x16xf32>
    %c0_3 = arith.constant 0 : index
    %c0_4 = arith.constant 0 : index
    %5 = vector.load %arg3[%c0_3, %c0_4] : memref<1x256xf32, #tpu.memory_space<vmem>>, vector<1x16xf32>
    %6 = vector.broadcast %5 : vector<1x16xf32> to vector<8x16xf32>
    %7 = arith.addf %4, %6 : vector<8x16xf32>
    %8 = vector.extract_strided_slice %3 {offsets = [0, 128], sizes = [8, 16], strides = [1, 1]} : vector<8x256xf32> to vector<8x16xf32>
    %c0_5 = arith.constant 0 : index
    %c128 = arith.constant 128 : index
    %9 = vector.load %arg3[%c0_5, %c128] : memref<1x256xf32, #tpu.memory_space<vmem>>, vector<1x16xf32>
    %10 = vector.broadcast %9 : vector<1x16xf32> to vector<8x16xf32>
    %11 = arith.addf %8, %10 : vector<8x16xf32>
    %c0_6 = arith.constant 0 : index
    %c0_7 = arith.constant 0 : index
    %12 = vector.load %arg4[%c0_6, %c0_7] : memref<8x16xf32, #tpu.memory_space<vmem>>, vector<8x16xf32>
    tpu.vector_store %arg4[%c0_6, %c0_7], %7 {strides = array<i32>} : memref<8x16xf32, #tpu.memory_space<vmem>>, vector<8x16xf32>,
    %cst_8 = arith.constant -1.000000e+01 : f32
    %cst_9 = arith.constant 2.000000e+00 : f32
    %13 = vector.broadcast %cst_8 : f32 to vector<8x16xf32>
    %14 = arith.maximumf %13, %11 : vector<8x16xf32>
    %15 = vector.broadcast %cst_9 : f32 to vector<8x16xf32>
    %16 = arith.minimumf %15, %14 : vector<8x16xf32>
    %c0_10 = arith.constant 0 : index
    %c0_11 = arith.constant 0 : index
    %17 = vector.load %arg5[%c0_10, %c0_11] : memref<8x16xf32, #tpu.memory_space<vmem>>, vector<8x16xf32>
    tpu.vector_store %arg5[%c0_10, %c0_11], %16 {strides = array<i32>} : memref<8x16xf32, #tpu.memory_space<vmem>>, vector<8x16xf32>,
    return
  }
  func.func @transform_0(%arg0: i32) -> (i32, i32) {
    %c0_i32 = arith.constant 0 : i32
    %c0_i32_0 = arith.constant 0 : i32
    return %arg0, %c0_i32 : i32, i32
  }
  func.func @transform_1(%arg0: i32) -> (i32, i32) {
    %c0_i32 = arith.constant 0 : i32
    %c0_i32_0 = arith.constant 0 : i32
    %c0_i32_1 = arith.constant 0 : i32
    return %c0_i32, %c0_i32_0 : i32, i32
  }
  func.func @transform_2(%arg0: i32) -> (i32, i32) {
    %c0_i32 = arith.constant 0 : i32
    %c0_i32_0 = arith.constant 0 : i32
    %c0_i32_1 = arith.constant 0 : i32
    return %c0_i32, %c0_i32_0 : i32, i32
  }
  func.func @transform_3(%arg0: i32) -> (i32, i32) {
    %c0_i32 = arith.constant 0 : i32
    %c0_i32_0 = arith.constant 0 : i32
    return %arg0, %c0_i32 : i32, i32
  }
  func.func @transform_4(%arg0: i32) -> (i32, i32) {
    %c0_i32 = arith.constant 0 : i32
    %c0_i32_0 = arith.constant 0 : i32
    return %arg0, %c0_i32 : i32, i32
  }
}

module attributes {stable_mosaic.version = 11 : i64} {
  func.func @_diag_gaussian_kernel(%arg0: i32, %arg1: memref<8x32xf32, #tpu.memory_space<vmem>>, %arg2: memref<32x256xbf16, #tpu.memory_space<vmem>>, %arg3: memref<1x256xf32, #tpu.memory_space<vmem>>, %arg4: memref<8x16xf32, #tpu.memory_space<vmem>>, %arg5: memref<8x16xf32, #tpu.memory_space<vmem>>) attributes {dimension_semantics = [#tpu.dimension_semantics<parallel>], iteration_bounds = array<i64: 1>, scalar_prefetch = 0 : i64, scratch_operands = 0 : i64, tpu.core_type = #tpu.core_type<tc>, window_params = [{transform_indices = @transform_0, window_bounds = array<i64: 8, 32>}, {pipeline_mode = #tpu.pipeline_mode<synchronous>, transform_indices = @transform_1, window_bounds = array<i64: 32, 256>}, {pipeline_mode = #tpu.pipeline_mode<synchronous>, transform_indices = @transform_2, window_bounds = array<i64: 1, 256>}, {transform_indices = @transform_3, window_bounds = array<i64: 8, 16>}, {transform_indices = @transform_4, window_bounds = array<i64: 8, 16>}]} {
    %c0 = arith.constant 0 : index
    %c0_0 = arith.constant 0 : index
    %0 = vector.load %arg1[%c0, %c0_0] : memref<8x32xf32, #tpu.memory_space<vmem>>, vector<8x32xf32>
    %1 = arith.truncf %0 : vector<8x32xf32> to vector<8x32xbf16>
    %c0_1 = arith.constant 0 : index
    %c0_2 = arith.constant 0 : index
    %2 = vector.load %arg2[%c0_1, %c0_2] : memref<32x256xbf16, #tpu.memory_space<vmem>>, vector<32x256xbf16>
    %cst = arith.constant dense<0.000000e+00> : vector<8x256xf32>
    %3 = tpu.matmul %1, %2, %cst {dimension_numbers = #tpu.dot_dimension_numbers<[1], [0], [0], [1], [0, 0, 1, 1], [], []>} : vector<8x32xbf16>, vector<32x256xbf16>, vector<8x256xf32> -> vector<8x256xf32>
    %4 = vector.extract_strided_slice %3 {offsets = [0, 0], sizes = [8, 16], strides = [1, 1]} : vector<8x256xf32> to vector<8x16xf32>
    %c0_3 = arith.constant 0 : index
    %c0_4 = arith.constant 0 : index
    %5 = vector.load %arg3[%c0_3, %c0_4] : memref<1x256xf32, #tpu.memory_space<vmem>>, vector<1x16xf32>
    %6 = vector.broadcast %5 : vector<1x16xf32> to vector<8x16xf32>
    %7 = arith.addf %4, %6 : vector<8x16xf32>
    %8 = vector.extract_strided_slice %3 {offsets = [0, 128], sizes = [8, 16], strides = [1, 1]} : vector<8x256xf32> to vector<8x16xf32>
    %c0_5 = arith.constant 0 : index
    %c128 = arith.constant 128 : index
    %9 = vector.load %arg3[%c0_5, %c128] : memref<1x256xf32, #tpu.memory_space<vmem>>, vector<1x16xf32>
    %10 = vector.broadcast %9 : vector<1x16xf32> to vector<8x16xf32>
    %11 = arith.addf %8, %10 : vector<8x16xf32>
    %c0_6 = arith.constant 0 : index
    %c0_7 = arith.constant 0 : index
    %12 = vector.load %arg4[%c0_6, %c0_7] : memref<8x16xf32, #tpu.memory_space<vmem>>, vector<8x16xf32>
    tpu.vector_store %arg4[%c0_6, %c0_7], %7 {strides = array<i32>} : memref<8x16xf32, #tpu.memory_space<vmem>>, vector<8x16xf32>,
    %cst_8 = arith.constant -1.000000e+01 : f32
    %cst_9 = arith.constant 2.000000e+00 : f32
    %13 = vector.broadcast %cst_8 : f32 to vector<8x16xf32>
    %14 = arith.maximumf %13, %11 : vector<8x16xf32>
    %15 = vector.broadcast %cst_9 : f32 to vector<8x16xf32>
    %16 = arith.minimumf %15, %14 : vector<8x16xf32>
    %c0_10 = arith.constant 0 : index
    %c0_11 = arith.constant 0 : index
    %17 = vector.load %arg5[%c0_10, %c0_11] : memref<8x16xf32, #tpu.memory_space<vmem>>, vector<8x16xf32>
    tpu.vector_store %arg5[%c0_10, %c0_11], %16 {strides = array<i32>} : memref<8x16xf32, #tpu.memory_space<vmem>>, vector<8x16xf32>,
    return
  }
  func.func @transform_0(%arg0: i32) -> (i32, i32) {
    %c0_i32 = arith.constant 0 : i32
    %c0_i32_0 = arith.constant 0 : i32
    return %arg0, %c0_i32 : i32, i32
  }
  func.func @transform_1(%arg0: i32) -> (i32, i32) {
    %c0_i32 = arith.constant 0 : i32
    %c0_i32_0 = arith.constant 0 : i32
    %c0_i32_1 = arith.constant 0 : i32
    return %c0_i32, %c0_i32_0 : i32, i32
  }
  func.func @transform_2(%arg0: i32) -> (i32, i32) {
    %c0_i32 = arith.constant 0 : i32
    %c0_i32_0 = arith.constant 0 : i32
    %c0_i32_1 = arith.constant 0 : i32
    return %c0_i32, %c0_i32_0 : i32, i32
  }
  func.func @transform_3(%arg0: i32) -> (i32, i32) {
    %c0_i32 = arith.constant 0 : i32
    %c0_i32_0 = arith.constant 0 : i32
    return %arg0, %c0_i32 : i32, i32
  }
  func.func @transform_4(%arg0: i32) -> (i32, i32) {
    %c0_i32 = arith.constant 0 : i32
    %c0_i32_0 = arith.constant 0 : i32
    return %arg0, %c0_i32 : i32, i32
  }
}

</mosaic_0001>

<llo_original>
// kernel: tpu_custom_call.1
$region0: #{tpu_custom_call.1}
  #allocation0 [shape = 'u32[]', space=smem, size = 0x4, offset = 0x4, fixed_abs, tag = 'smem constant byte address 0x4 - core index']
  #allocation1 [shape = 'u32[72,128]{1,0:T(1,128)}', space=vmem, size = 0x9000, scoped, tag = 'internal scratch']
  %s0 = inlined_call_operand.hbm [shape: f32[8,32], index: 0, kind: input, shape index: {}]
  %s1 = inlined_call_operand.hbm [shape: bf16[32,256], index: 1, kind: input, shape index: {}]
  %s2 = inlined_call_operand.hbm [shape: f32[1,256], index: 2, kind: input, shape index: {}]
  %s3 = inlined_call_operand.hbm [shape: f32[8,16], index: 3, kind: output, shape index: {0}]
  %s4 = inlined_call_operand.hbm [shape: f32[8,16], index: 4, kind: output, shape index: {1}]
  %5 = xla_tuple %s3, %s4
  %s6 = sld [smem:[#allocation0]]
  $region42: #{tpu_custom_call.1} parent=0
    _
  %s8 = ssub.s32 1, %s6
  %s9 = scalar_select 0, %s8, %s6
  $region1: #{tpu_custom_call.1} parent=0
    #allocation2 [shape = 'u8[4096]{0}', space=vmem, size = 0x1000, scoped, tag = 'input window, operand 0, single buffered']
    #allocation3 [shape = 's32[1]{0}', space=sflag, size = 0x4, scoped, tag = 'scoped memory for tpu_custom_call.1']
    #allocation4 [shape = 's32[1]{0}', space=sflag, size = 0x4, scoped, tag = 'scoped memory for tpu_custom_call.1']
    #allocation5 [shape = 'u8[16384]{0}', space=vmem, size = 0x4000, scoped, tag = 'input window, operand 1, single buffered']
    #allocation6 [shape = 's32[1]{0}', space=sflag, size = 0x4, scoped, tag = 'scoped memory for tpu_custom_call.1']
    #allocation7 [shape = 'u8[1024]{0}', space=vmem, size = 0x400, scoped, tag = 'input window, operand 2, single buffered']
    #allocation8 [shape = 'u8[4096]{0}', space=vmem, size = 0x1000, scoped, tag = 'output window, operand 0, single buffered']
    #allocation9 [shape = 'u8[4096]{0}', space=vmem, size = 0x1000, scoped, tag = 'output window, operand 1, single buffered']
    #allocation10 [shape = 's32[1]{0}', space=sflag, size = 0x4, scoped, tag = 'scoped memory for tpu_custom_call.1']
    %10 = vsyncpa [#allocation3], 0
    %11 = vsyncpa [#allocation6], 0
    %12 = vsyncpa [#allocation4], 0
    %13 = vsyncpa [#allocation10], 0
    // Predicated region
    $region2: #{tpu_custom_call.1} parent=1 // pred_check
      _
    $region3: #{tpu_custom_call.1} parent=1 // pred_check_branch
      %15 = sbr.rel (0) target = $region5
    $region4: #{tpu_custom_call.1} parent=1 // pred_region
      %17 = vsyncadd [#allocation3], 0
      %s19 = sshll.u32 %s0, 4
      %s20 = int_to_ptr.hbm [resolvable:$true] %s19
      %s21 = sshll.u32 [#allocation2], 4
      %s22 = int_to_ptr.vmem [resolvable:$true] %s21
      %24 = dma.hbm_to_vmem [thread:$0]  %s20, 128, %s22, [#allocation3]
    $region5: #{tpu_custom_call.1} parent=1 // pred_fallthru
      _
    // Predicated region
    $region6: #{tpu_custom_call.1} parent=1 // pred_check
      _
    $region7: #{tpu_custom_call.1} parent=1 // pred_check_branch
      %26 = sbr.rel (0) target = $region9
    $region8: #{tpu_custom_call.1} parent=1 // pred_region
      %28 = vsyncadd [#allocation6], 0
      %s29 = sshll.u32 %s1, 4
      %s30 = int_to_ptr.hbm [resolvable:$true] %s29
      %s31 = sshll.u32 [#allocation5], 4
      %s32 = int_to_ptr.vmem [resolvable:$true] %s31
      %37 = dma.hbm_to_vmem [thread:$0]  %s30, 512, %s32, [#allocation6], 128, 128, 8
    $region9: #{tpu_custom_call.1} parent=1 // pred_fallthru
      _
    // Predicated region
    $region10: #{tpu_custom_call.1} parent=1 // pred_check
      _
    $region11: #{tpu_custom_call.1} parent=1 // pred_check_branch
      %39 = sbr.rel (0) target = $region13
    $region12: #{tpu_custom_call.1} parent=1 // pred_region
      %41 = vsyncadd [#allocation6], 0
      %s43 = sshll.u32 %s2, 4
      %s44 = int_to_ptr.hbm [resolvable:$true] %s43
      %s45 = sshll.u32 [#allocation7], 4
      %s46 = int_to_ptr.vmem [resolvable:$true] %s45
      %48 = dma.hbm_to_vmem [thread:$0]  %s44, 32, %s46, [#allocation6]
    $region13: #{tpu_custom_call.1} parent=1 // pred_fallthru
      _
    // Predicated region
    $region14: #{tpu_custom_call.1} parent=1 // pred_check
      _
    $region15: #{tpu_custom_call.1} parent=1 // pred_check_branch
      %50 = sbr.rel (0) target = $region17
    $region16: #{tpu_custom_call.1} parent=1 // pred_region
      %52 = dma.done [#allocation3], 128
    $region17: #{tpu_custom_call.1} parent=1 // pred_fallthru
      _
    // Predicated region
    $region18: #{tpu_custom_call.1} parent=1 // pred_check
      _
    $region19: #{tpu_custom_call.1} parent=1 // pred_check_branch
      %54 = sbr.rel (0) target = $region21
    $region20: #{tpu_custom_call.1} parent=1 // pred_region
      %56 = dma.done [#allocation6], 512
    $region21: #{tpu_custom_call.1} parent=1 // pred_fallthru
      _
    // Predicated region
    $region22: #{tpu_custom_call.1} parent=1 // pred_check
      _
    $region23: #{tpu_custom_call.1} parent=1 // pred_check_branch
      %58 = sbr.rel (0) target = $region25
    $region24: #{tpu_custom_call.1} parent=1 // pred_region
      %60 = dma.done [#allocation6], 32
    $region25: #{tpu_custom_call.1} parent=1 // pred_fallthru
      _
    %v62 = vld [vmem:[#allocation2] sm:$0xff]
    %v63 = vpack.c.bf16 %v62, %v62
    %v64 = vld [vmem:[#allocation5] sm:$0xff]
    %v65 = vld [vmem:[#allocation5 + $0x8] sm:$0xff]
    %v66 = vld [vmem:[#allocation5 + $0x10] sm:$0xff]
    %v67 = vld [vmem:[#allocation5 + $0x18] sm:$0xff]
    %v72 = vunpack.c.l.b16 %v64
    %v73 = vunpack.c.h.b16 %v64
    %v74 = vunpack.c.l.b16 %v65
    %v75 = vunpack.c.h.b16 %v65
    %v76 = vunpack.c.l.b16 %v66
    %v77 = vunpack.c.h.b16 %v66
    %v78 = vunpack.c.l.b16 %v67
    %v79 = vunpack.c.h.b16 %v67
    %v80 = vpack.c.b16 %v74, %v72
    %v81 = vpack.c.b16 %v75, %v73
    %v82 = vpack.c.b16 %v78, %v76
    %v83 = vpack.c.b16 %v79, %v77
    %vm88 = vcmask 261120
    %v90 = vsel %vm88, %v63, 0
    %92 = vmatpush.bf16.msra.mxu0 0
    %93 = vmatpush.bf16.msra.mxu0 0
    %94 = vmatpush.bf16.msra.mxu0 0
    %95 = vmatpush.bf16.msra.mxu0 0
    %96 = vmatpush.bf16.msra.mxu0 0
    %97 = vmatpush.bf16.msra.mxu0 0
    %98 = vmatpush.bf16.msra.mxu0 %v82
    %99 = vmatpush.bf16.msra.mxu0 %v80
    %100 = vmatmul.bf16.gmra.mxu0 %v90
    %v101 = vpop.f32.mrf.mxu0
    %v102 = vadd.f32 0.0, %v101
    %v103 = vpop.f32.mrf.mxu0
    %104 = vdwg.mxu0
    %105 = vmatpush.bf16.msra.mxu0 0
    %106 = vmatpush.bf16.msra.mxu0 0
    %107 = vmatpush.bf16.msra.mxu0 0
    %108 = vmatpush.bf16.msra.mxu0 0
    %109 = vmatpush.bf16.msra.mxu0 0
    %110 = vmatpush.bf16.msra.mxu0 0
    %111 = vmatpush.bf16.msra.mxu0 %v83
    %112 = vmatpush.bf16.msra.mxu0 %v81
    %113 = vmatmul.bf16.gmra.mxu0 %v90
    %v114 = vpop.f32.mrf.mxu0
    %v115 = vadd.f32 0.0, %v114
    %v116 = vpop.f32.mrf.mxu0
    %117 = vdwg.mxu0
    %v118 = vld [vmem:[#allocation7] sm:$0x1]
    %v120 = vperm.slane %v118, 0
    %v122 = vadd.f32 %v102, %v120
    %v123 = vld [vmem:[#allocation7 + $0x1] sm:$0x1]
    %v125 = vperm.slane %v123, 0
    %v127 = vadd.f32 %v115, %v125
    %vm128 = vcmask 130048
    %129 = vst.msk [vmem:[#allocation8] sm:$0xff] %vm128, %v122
    %v130 = vmax.f32 %v127, -10.0
    %v131 = vmin.f32 %v130, 2.0
    %132 = vst.msk [vmem:[#allocation9] sm:$0xff] %vm128, %v131
    // Predicated region
    $region26: #{tpu_custom_call.1} parent=1 // pred_check
      _
    $region27: #{tpu_custom_call.1} parent=1 // pred_check_branch
      %134 = sbr.rel (0) target = $region29
    $region28: #{tpu_custom_call.1} parent=1 // pred_region
      %136 = vsyncadd [#allocation4], 0
      %s138 = sshll.u32 [#allocation8], 4
      %s139 = int_to_ptr.vmem [resolvable:$true] %s138
      %s140 = sshll.u32 %s3, 4
      %s141 = int_to_ptr.hbm [resolvable:$true] %s140
      %143 = dma.vmem_to_hbm [thread:$0]  %s139, 128, %s141, [#allocation4]
    $region29: #{tpu_custom_call.1} parent=1 // pred_fallthru
      _
    // Predicated region
    $region30: #{tpu_custom_call.1} parent=1 // pred_check
      _
    $region31: #{tpu_custom_call.1} parent=1 // pred_check_branch
      %145 = sbr.rel (0) target = $region33
    $region32: #{tpu_custom_call.1} parent=1 // pred_region
      %147 = vsyncadd [#allocation10], 0
      %s149 = sshll.u32 [#allocation9], 4
      %s150 = int_to_ptr.vmem [resolvable:$true] %s149
      %s151 = sshll.u32 %s4, 4
      %s152 = int_to_ptr.hbm [resolvable:$true] %s151
      %154 = dma.vmem_to_hbm [thread:$0]  %s150, 128, %s152, [#allocation10]
    $region33: #{tpu_custom_call.1} parent=1 // pred_fallthru
      _
    // Predicated region
    $region34: #{tpu_custom_call.1} parent=1 // pred_check
      _
    $region35: #{tpu_custom_call.1} parent=1 // pred_check_branch
      %156 = sbr.rel (0) target = $region37
    $region36: #{tpu_custom_call.1} parent=1 // pred_region
      %158 = dma.done [#allocation4], 128
    $region37: #{tpu_custom_call.1} parent=1 // pred_fallthru
      _
    // Predicated region
    $region38: #{tpu_custom_call.1} parent=1 // pred_check
      _
    $region39: #{tpu_custom_call.1} parent=1 // pred_check_branch
      %160 = sbr.rel (0) target = $region41
    $region40: #{tpu_custom_call.1} parent=1 // pred_region
      %162 = dma.done [#allocation10], 128
    $region41: #{tpu_custom_call.1} parent=1 // pred_fallthru
      _
    %163 = vsyncpa [#allocation3], 1
    %164 = vsyncpa [#allocation6], 1
    %165 = vsyncpa [#allocation4], 1
    %166 = vsyncpa [#allocation10], 1

// kernel: tpu_custom_call.1
$region0: #{tpu_custom_call.1}
  #allocation0 [shape = 'u32[]', space=smem, size = 0x4, offset = 0x4, fixed_abs, tag = 'smem constant byte address 0x4 - core index']
  #allocation1 [shape = 'u32[72,128]{1,0:T(1,128)}', space=vmem, size = 0x9000, scoped, tag = 'internal scratch']
  %s0 = inlined_call_operand.hbm [shape: f32[8,32], index: 0, kind: input, shape index: {}]
  %s1 = inlined_call_operand.hbm [shape: bf16[32,256], index: 1, kind: input, shape index: {}]
  %s2 = inlined_call_operand.hbm [shape: f32[1,256], index: 2, kind: input, shape index: {}]
  %s3 = inlined_call_operand.hbm [shape: f32[8,16], index: 3, kind: output, shape index: {0}]
  %s4 = inlined_call_operand.hbm [shape: f32[8,16], index: 4, kind: output, shape index: {1}]
  %5 = xla_tuple %s3, %s4
  %s6 = sld [smem:[#allocation0]]
  $region42: #{tpu_custom_call.1} parent=0
    _
  %s8 = ssub.s32 1, %s6
  %s9 = scalar_select 0, %s8, %s6
  $region1: #{tpu_custom_call.1} parent=0
    #allocation2 [shape = 'u8[4096]{0}', space=vmem, size = 0x1000, scoped, tag = 'input window, operand 0, single buffered']
    #allocation3 [shape = 's32[1]{0}', space=sflag, size = 0x4, scoped, tag = 'scoped memory for tpu_custom_call.1']
    #allocation4 [shape = 's32[1]{0}', space=sflag, size = 0x4, scoped, tag = 'scoped memory for tpu_custom_call.1']
    #allocation5 [shape = 'u8[16384]{0}', space=vmem, size = 0x4000, scoped, tag = 'input window, operand 1, single buffered']
    #allocation6 [shape = 's32[1]{0}', space=sflag, size = 0x4, scoped, tag = 'scoped memory for tpu_custom_call.1']
    #allocation7 [shape = 'u8[1024]{0}', space=vmem, size = 0x400, scoped, tag = 'input window, operand 2, single buffered']
    #allocation8 [shape = 'u8[4096]{0}', space=vmem, size = 0x1000, scoped, tag = 'output window, operand 0, single buffered']
    #allocation9 [shape = 'u8[4096]{0}', space=vmem, size = 0x1000, scoped, tag = 'output window, operand 1, single buffered']
    #allocation10 [shape = 's32[1]{0}', space=sflag, size = 0x4, scoped, tag = 'scoped memory for tpu_custom_call.1']
    %10 = vsyncpa [#allocation3], 0
    %11 = vsyncpa [#allocation6], 0
    %12 = vsyncpa [#allocation4], 0
    %13 = vsyncpa [#allocation10], 0
    // Predicated region
    $region2: #{tpu_custom_call.1} parent=1 // pred_check
      _
    $region3: #{tpu_custom_call.1} parent=1 // pred_check_branch
      %15 = sbr.rel (0) target = $region5
    $region4: #{tpu_custom_call.1} parent=1 // pred_region
      %17 = vsyncadd [#allocation3], 0
      %s19 = sshll.u32 %s0, 4
      %s20 = int_to_ptr.hbm [resolvable:$true] %s19
      %s21 = sshll.u32 [#allocation2], 4
      %s22 = int_to_ptr.vmem [resolvable:$true] %s21
      %24 = dma.hbm_to_vmem [thread:$0]  %s20, 128, %s22, [#allocation3]
    $region5: #{tpu_custom_call.1} parent=1 // pred_fallthru
      _
    // Predicated region
    $region6: #{tpu_custom_call.1} parent=1 // pred_check
      _
    $region7: #{tpu_custom_call.1} parent=1 // pred_check_branch
      %26 = sbr.rel (0) target = $region9
    $region8: #{tpu_custom_call.1} parent=1 // pred_region
      %28 = vsyncadd [#allocation6], 0
      %s29 = sshll.u32 %s1, 4
      %s30 = int_to_ptr.hbm [resolvable:$true] %s29
      %s31 = sshll.u32 [#allocation5], 4
      %s32 = int_to_ptr.vmem [resolvable:$true] %s31
      %37 = dma.hbm_to_vmem [thread:$0]  %s30, 512, %s32, [#allocation6], 128, 128, 8
    $region9: #{tpu_custom_call.1} parent=1 // pred_fallthru
      _
    // Predicated region
    $region10: #{tpu_custom_call.1} parent=1 // pred_check
      _
    $region11: #{tpu_custom_call.1} parent=1 // pred_check_branch
      %39 = sbr.rel (0) target = $region13
    $region12: #{tpu_custom_call.1} parent=1 // pred_region
      %41 = vsyncadd [#allocation6], 0
      %s43 = sshll.u32 %s2, 4
      %s44 = int_to_ptr.hbm [resolvable:$true] %s43
      %s45 = sshll.u32 [#allocation7], 4
      %s46 = int_to_ptr.vmem [resolvable:$true] %s45
      %48 = dma.hbm_to_vmem [thread:$0]  %s44, 32, %s46, [#allocation6]
    $region13: #{tpu_custom_call.1} parent=1 // pred_fallthru
      _
    // Predicated region
    $region14: #{tpu_custom_call.1} parent=1 // pred_check
      _
    $region15: #{tpu_custom_call.1} parent=1 // pred_check_branch
      %50 = sbr.rel (0) target = $region17
    $region16: #{tpu_custom_call.1} parent=1 // pred_region
      %52 = dma.done [#allocation3], 128
    $region17: #{tpu_custom_call.1} parent=1 // pred_fallthru
      _
    // Predicated region
    $region18: #{tpu_custom_call.1} parent=1 // pred_check
      _
    $region19: #{tpu_custom_call.1} parent=1 // pred_check_branch
      %54 = sbr.rel (0) target = $region21
    $region20: #{tpu_custom_call.1} parent=1 // pred_region
      %56 = dma.done [#allocation6], 512
    $region21: #{tpu_custom_call.1} parent=1 // pred_fallthru
      _
    // Predicated region
    $region22: #{tpu_custom_call.1} parent=1 // pred_check
      _
    $region23: #{tpu_custom_call.1} parent=1 // pred_check_branch
      %58 = sbr.rel (0) target = $region25
    $region24: #{tpu_custom_call.1} parent=1 // pred_region
      %60 = dma.done [#allocation6], 32
    $region25: #{tpu_custom_call.1} parent=1 // pred_fallthru
      _
    %v62 = vld [vmem:[#allocation2] sm:$0xff]
    %v63 = vpack.c.bf16 %v62, %v62
    %v64 = vld [vmem:[#allocation5] sm:$0xff]
    %v65 = vld [vmem:[#allocation5 + $0x8] sm:$0xff]
    %v66 = vld [vmem:[#allocation5 + $0x10] sm:$0xff]
    %v67 = vld [vmem:[#allocation5 + $0x18] sm:$0xff]
    %v72 = vunpack.c.l.b16 %v64
    %v73 = vunpack.c.h.b16 %v64
    %v74 = vunpack.c.l.b16 %v65
    %v75 = vunpack.c.h.b16 %v65
    %v76 = vunpack.c.l.b16 %v66
    %v77 = vunpack.c.h.b16 %v66
    %v78 = vunpack.c.l.b16 %v67
    %v79 = vunpack.c.h.b16 %v67
    %v80 = vpack.c.b16 %v74, %v72
    %v81 = vpack.c.b16 %v75, %v73
    %v82 = vpack.c.b16 %v78, %v76
    %v83 = vpack.c.b16 %v79, %v77
    %vm88 = vcmask 261120
    %v90 = vsel %vm88, %v63, 0
    %92 = vmatpush.bf16.msra.mxu0 0
    %93 = vmatpush.bf16.msra.mxu0 0
    %94 = vmatpush.bf16.msra.mxu0 0
    %95 = vmatpush.bf16.msra.mxu0 0
    %96 = vmatpush.bf16.msra.mxu0 0
    %97 = vmatpush.bf16.msra.mxu0 0
    %98 = vmatpush.bf16.msra.mxu0 %v82
    %99 = vmatpush.bf16.msra.mxu0 %v80
    %100 = vmatmul.bf16.gmra.mxu0 %v90
    %v101 = vpop.f32.mrf.mxu0
    %v102 = vadd.f32 0.0, %v101
    %v103 = vpop.f32.mrf.mxu0
    %104 = vdwg.mxu0
    %105 = vmatpush.bf16.msra.mxu0 0
    %106 = vmatpush.bf16.msra.mxu0 0
    %107 = vmatpush.bf16.msra.mxu0 0
    %108 = vmatpush.bf16.msra.mxu0 0
    %109 = vmatpush.bf16.msra.mxu0 0
    %110 = vmatpush.bf16.msra.mxu0 0
    %111 = vmatpush.bf16.msra.mxu0 %v83
    %112 = vmatpush.bf16.msra.mxu0 %v81
    %113 = vmatmul.bf16.gmra.mxu0 %v90
    %v114 = vpop.f32.mrf.mxu0
    %v115 = vadd.f32 0.0, %v114
    %v116 = vpop.f32.mrf.mxu0
    %117 = vdwg.mxu0
    %v118 = vld [vmem:[#allocation7] sm:$0x1]
    %v120 = vperm.slane %v118, 0
    %v122 = vadd.f32 %v102, %v120
    %v123 = vld [vmem:[#allocation7 + $0x1] sm:$0x1]
    %v125 = vperm.slane %v123, 0
    %v127 = vadd.f32 %v115, %v125
    %vm128 = vcmask 130048
    %129 = vst.msk [vmem:[#allocation8] sm:$0xff] %vm128, %v122
    %v130 = vmax.f32 %v127, -10.0
    %v131 = vmin.f32 %v130, 2.0
    %132 = vst.msk [vmem:[#allocation9] sm:$0xff] %vm128, %v131
    // Predicated region
    $region26: #{tpu_custom_call.1} parent=1 // pred_check
      _
    $region27: #{tpu_custom_call.1} parent=1 // pred_check_branch
      %134 = sbr.rel (0) target = $region29
    $region28: #{tpu_custom_call.1} parent=1 // pred_region
      %136 = vsyncadd [#allocation4], 0
      %s138 = sshll.u32 [#allocation8], 4
      %s139 = int_to_ptr.vmem [resolvable:$true] %s138
      %s140 = sshll.u32 %s3, 4
      %s141 = int_to_ptr.hbm [resolvable:$true] %s140
      %143 = dma.vmem_to_hbm [thread:$0]  %s139, 128, %s141, [#allocation4]
    $region29: #{tpu_custom_call.1} parent=1 // pred_fallthru
      _
    // Predicated region
    $region30: #{tpu_custom_call.1} parent=1 // pred_check
      _
    $region31: #{tpu_custom_call.1} parent=1 // pred_check_branch
      %145 = sbr.rel (0) target = $region33
    $region32: #{tpu_custom_call.1} parent=1 // pred_region
      %147 = vsyncadd [#allocation10], 0
      %s149 = sshll.u32 [#allocation9], 4
      %s150 = int_to_ptr.vmem [resolvable:$true] %s149
      %s151 = sshll.u32 %s4, 4
      %s152 = int_to_ptr.hbm [resolvable:$true] %s151
      %154 = dma.vmem_to_hbm [thread:$0]  %s150, 128, %s152, [#allocation10]
    $region33: #{tpu_custom_call.1} parent=1 // pred_fallthru
      _
    // Predicated region
    $region34: #{tpu_custom_call.1} parent=1 // pred_check
      _
    $region35: #{tpu_custom_call.1} parent=1 // pred_check_branch
      %156 = sbr.rel (0) target = $region37
    $region36: #{tpu_custom_call.1} parent=1 // pred_region
      %158 = dma.done [#allocation4], 128
    $region37: #{tpu_custom_call.1} parent=1 // pred_fallthru
      _
    // Predicated region
    $region38: #{tpu_custom_call.1} parent=1 // pred_check
      _
    $region39: #{tpu_custom_call.1} parent=1 // pred_check_branch
      %160 = sbr.rel (0) target = $region41
    $region40: #{tpu_custom_call.1} parent=1 // pred_region
      %162 = dma.done [#allocation10], 128
    $region41: #{tpu_custom_call.1} parent=1 // pred_fallthru
      _
    %163 = vsyncpa [#allocation3], 1
    %164 = vsyncpa [#allocation6], 1
    %165 = vsyncpa [#allocation4], 1
    %166 = vsyncpa [#allocation10], 1

</llo_original>
